<compile_context>
chip_gen: v6e
topology: v6e:2x2x1
jax: 0.10.0
libtpu: 0.0.40
codegen_flags: <defaults>
</compile_context>

<pallas_src>
import numpy as np
import jax
import jax.numpy as jnp
from jax.experimental import pallas as pl
from jax.experimental.pallas import tpu as pltpu


# ----------------------------------------------------------------------------
# Glue: bilinear interpolation matrix (PyTorch semantics, align_corners=False,
# antialias=False -- which is what antialias='warn' means for tensor inputs).
# ----------------------------------------------------------------------------
def bilinear_resize_matrix(in_size: int, out_size: int) -> jnp.ndarray:
    scale = in_size / out_size
    idx = np.arange(out_size, dtype=np.float64)
    src = (idx + 0.5) * scale - 0.5
    src = np.maximum(src, 0.0)                    # PyTorch clamps negative coords
    lo = np.floor(src)
    t = src - lo
    lo = lo.astype(np.int64)
    hi = np.minimum(lo + 1, in_size - 1)
    lo = np.minimum(lo, in_size - 1)
    m = np.zeros((out_size, in_size), dtype=np.float64)
    m[np.arange(out_size), lo] += (1.0 - t)
    m[np.arange(out_size), hi] += t
    return jnp.asarray(m, dtype=jnp.float32)


def compute_resized_hw(h: int, w: int, size: int):
    # torchvision resize with int size: shorter edge -> size, keep aspect ratio.
    if w <= h:
        new_w, new_h = size, int(size * h / w)
    else:
        new_h, new_w = size, int(size * w / h)
    return new_h, new_w


# ----------------------------------------------------------------------------
# Kernel factory.  Each grid step handles P image planes:
#   rows_first:  tmp[i]  = Rh_c @ plane[i]      (contract H, per plane) -> (crop, W)
#                out     = [tmp] @ Rw_c^T       (one big GEMM)          -> (P*crop, crop)
#   cols_first:  tmp     = [planes] @ Rw_c^T    (one big GEMM)          -> (P*H, crop)
#                out[i]  = Rh_c @ tmp[i]        (contract H, per plane) -> (crop, crop)
# followed by the fused normalize  out * (1/std) - mean/std.
# ----------------------------------------------------------------------------
def _make_kernel(p: int, crop: int, rows_first: bool):
    if rows_first:
        def kernel(rh_ref, rwT_ref, scale_ref, bias_ref, x_ref, o_ref, tmp_ref):
            rh = rh_ref[...]                                   # (crop, H)
            for i in range(p):
                tmp_ref[pl.ds(i * crop, crop), :] = jnp.dot(
                    rh, x_ref[i], preferred_element_type=jnp.float32)
            out = jnp.dot(tmp_ref[...], rwT_ref[...],
                          preferred_element_type=jnp.float32)  # (P*crop, crop)
            sc = scale_ref[...]                                # (P, 1, 1)
            bi = bias_ref[...]
            for i in range(p):
                o_ref[i] = out[i * crop:(i + 1) * crop, :] * sc[i] - bi[i]
        return kernel

    def kernel(rh_ref, rwT_ref, scale_ref, bias_ref, x_ref, o_ref):
        x = x_ref[...]                                         # (P, H, W)
        _, h, w = x.shape
        tmp = jnp.dot(x.reshape(p * h, w), rwT_ref[...],
                      preferred_element_type=jnp.float32)      # (P*H, crop)
        tmp = tmp.reshape(p, h, crop)
        rh = rh_ref[...]                                       # (crop, H)
        sc = scale_ref[...]                                    # (P, 1, 1)
        bi = bias_ref[...]
        for i in range(p):
            o_ref[i] = jnp.dot(rh, tmp[i],
                               preferred_element_type=jnp.float32) * sc[i] - bi[i]
    return kernel


def _choose_planes_per_step(num_planes, h, w, crop, rows_first,
                            budget_bytes=24 << 20, max_planes=64):
    """Largest divisor of num_planes whose per-step VMEM footprint fits budget."""
    def step_bytes(p):
        inter = p * crop * w if rows_first else p * h * crop
        return 4 * (2 * p * h * w            # input block (double-buffered)
                    + 2 * p * crop * crop    # output block (double-buffered)
                    + inter                  # staged intermediate / GEMM input
                    + p * crop * crop)       # big-GEMM result before store

    fixed = 4 * 2 * (crop * h + w * crop)    # resize matrices (double-buffered)
    best = 1
    for d in range(1, min(num_planes, max_planes) + 1):
        if num_planes % d == 0 and fixed + step_bytes(d) <= budget_bytes:
            best = d
    return best, fixed + step_bytes(best)


# ----------------------------------------------------------------------------
# Wrapper.
# ----------------------------------------------------------------------------
def image_classification_preprocess(img, *, crop_size, resize_size=256,
                                    mean=(0.485, 0.456, 0.406),
                                    std=(0.229, 0.224, 0.225)):
    """img: float32 NCHW already scaled to [0, 1].

    convert_image_dtype is an identity for float input.
    # TODO(synk): uint8 inputs (convert_image_dtype's 1/255 scaling) must be
    #             converted to float [0, 1] by the caller.
    """
    B, C, H, W = img.shape
    new_h, new_w = compute_resized_hw(H, W, resize_size)
    assert crop_size <= new_h and crop_size <= new_w
    # TODO(synk): center_crop padding path (crop larger than resized image) not implemented.
    # TODO(synk): antialias=True (wider variable-support taps) not implemented; this keeps
    #             the tensor-input antialias=False ('warn') semantics of the original module.

    rh = bilinear_resize_matrix(H, new_h)              # (new_h, H)
    rw = bilinear_resize_matrix(W, new_w)              # (new_w, W)
    top = int(round((new_h - crop_size) / 2.0))
    left = int(round((new_w - crop_size) / 2.0))
    rh_c = rh[top:top + crop_size, :]                  # (crop, H)   crop folded into resize
    rw_c = rw[left:left + crop_size, :]                # (crop, W)
    rw_c_T = rw_c.T                                    # (W, crop)

    mean_arr = jnp.asarray(mean, dtype=jnp.float32)
    inv_std = 1.0 / jnp.asarray(std, dtype=jnp.float32)
    BC = B * C
    # Fused normalize: out = resized * scale - bias, per plane.
    scale_planes = jnp.tile(inv_std, (B,)).reshape(BC, 1, 1)
    bias_planes = jnp.tile(mean_arr * inv_std, (B,)).reshape(BC, 1, 1)

    planes = img.reshape(BC, H, W)                     # free reshape

    rows_first = H >= W          # contract the larger spatial dim first
    P, vmem_est = _choose_planes_per_step(BC, H, W, crop_size, rows_first)
    # TODO(synk): planes too large for VMEM even at P=1 (huge photos on v7x's 64 MiB)
    #             would need a contraction-tiled variant with an f32 accumulator scratch.
    vmem_limit = int(min(112 << 20, max(32 << 20, vmem_est + (8 << 20))))

    scratch_shapes = ([pltpu.VMEM((P * crop_size, W), jnp.float32)]
                      if rows_first else [])

    grid_spec = pltpu.PrefetchScalarGridSpec(
        num_scalar_prefetch=0,
        grid=(BC // P,),
        in_specs=[
            # Resize matrices: constant index_map -> fetched only once by the pipeline.
            # TODO(synk): pipeline_mode=pl.Buffered(1) would halve their VMEM footprint.
            pl.BlockSpec((crop_size, H), lambda i: (0, 0)),
            pl.BlockSpec((W, crop_size), lambda i: (0, 0)),
            pl.BlockSpec((P, 1, 1), lambda i: (i, 0, 0)),        # scale per plane
            pl.BlockSpec((P, 1, 1), lambda i: (i, 0, 0)),        # bias per plane
            pl.BlockSpec((P, H, W), lambda i: (i, 0, 0)),        # P image planes
        ],
        # TODO(synk): optional lane-padded (multiple-of-128 wide) output variant would give
        #             unmasked vst on v5e if the consumer tolerates padded layout.
        out_specs=pl.BlockSpec((P, crop_size, crop_size), lambda i: (i, 0, 0)),
        scratch_shapes=scratch_shapes,
    )

    fn = pl.pallas_call(
        _make_kernel(P, crop_size, rows_first),
        grid_spec=grid_spec,
        out_shape=jax.ShapeDtypeStruct((BC, crop_size, crop_size), jnp.float32),
        compiler_params=pltpu.CompilerParams(
            dimension_semantics=("parallel",),    # fused B*C axis: megacore-shardable
            vmem_limit_bytes=vmem_limit),
    )
    out = fn(rh_c, rw_c_T, scale_planes, bias_planes, planes)
    return out.reshape(B, C, crop_size, crop_size), (rh_c, rw_c)


if __name__ == "__main__":
    key = jax.random.PRNGKey(0)
    k1, k2 = jax.random.split(key)

    mean = jnp.asarray([0.485, 0.456, 0.406], jnp.float32)
    std = jnp.asarray([0.229, 0.224, 0.225], jnp.float32)

    def run_case(k, B, C, H, W, resize_size, crop_size):
        img = jax.random.uniform(k, (B, C, H, W), dtype=jnp.float32)
        out, (rh_c, rw_c) = image_classification_preprocess(
            img, crop_size=crop_size, resize_size=resize_size)
        out = jax.block_until_ready(out)

        # High-precision pure-JAX reference of the same math.
        ref = jnp.einsum("oh,bchw,pw->bcop", rh_c, img, rw_c,
                         precision=jax.lax.Precision.HIGHEST)
        ref = (ref - mean[None, :, None, None]) / std[None, :, None, None]
        # The kernel runs the MXU at default (bf16-input, f32-accumulate)
        # precision; the tolerance covers that rounding for [0, 1] data.
        np.testing.assert_allclose(np.asarray(out), np.asarray(ref),
                                   rtol=0.0, atol=5e-2)

    run_case(k1, 2, 3, 16, 16, 24, 16)   # square input -> rows-first kernel path
    run_case(k2, 1, 3, 16, 32, 24, 16)   # wide input   -> cols-first kernel path
    print("KERNEL_OK")
</pallas_src>

<mosaic_0001>
module attributes {stable_mosaic.version = 11 : i64} {
  func.func @kernel(%arg0: i32, %arg1: memref<16x16xf32, #tpu.memory_space<vmem>>, %arg2: memref<16x16xf32, #tpu.memory_space<vmem>>, %arg3: memref<6x1x1xf32, #tpu.memory_space<vmem>>, %arg4: memref<6x1x1xf32, #tpu.memory_space<vmem>>, %arg5: memref<6x16x16xf32, #tpu.memory_space<vmem>>, %arg6: memref<6x16x16xf32, #tpu.memory_space<vmem>>, %arg7: memref<96x16xf32, #tpu.memory_space<vmem>>) attributes {dimension_semantics = [#tpu.dimension_semantics<parallel>], iteration_bounds = array<i64: 1>, scalar_prefetch = 0 : i64, scratch_operands = 1 : i64, tpu.core_type = #tpu.core_type<tc>, window_params = [{pipeline_mode = #tpu.pipeline_mode<synchronous>, transform_indices = @transform_0, window_bounds = array<i64: 16, 16>}, {pipeline_mode = #tpu.pipeline_mode<synchronous>, transform_indices = @transform_1, window_bounds = array<i64: 16, 16>}, {transform_indices = @transform_2, window_bounds = array<i64: 6, 1, 1>}, {transform_indices = @transform_3, window_bounds = array<i64: 6, 1, 1>}, {transform_indices = @transform_4, window_bounds = array<i64: 6, 16, 16>}, {transform_indices = @transform_5, window_bounds = array<i64: 6, 16, 16>}]} {
    %c0 = arith.constant 0 : index
    %c0_0 = arith.constant 0 : index
    %0 = vector.load %arg1[%c0, %c0_0] : memref<16x16xf32, #tpu.memory_space<vmem>>, vector<16x16xf32>
    %c0_1 = arith.constant 0 : index
    %c0_2 = arith.constant 0 : index
    %c0_3 = arith.constant 0 : index
    %1 = vector.load %arg5[%c0_1, %c0_2, %c0_3] : memref<6x16x16xf32, #tpu.memory_space<vmem>>, vector<1x16x16xf32>
    %2 = vector.shape_cast %1 : vector<1x16x16xf32> to vector<16x16xf32>
    %cst = arith.constant dense<0.000000e+00> : vector<16x16xf32>
    %3 = tpu.matmul %0, %2, %cst {dimension_numbers = #tpu.dot_dimension_numbers<[1], [0], [0], [1], [0, 0, 1, 1], [], []>} : vector<16x16xf32>, vector<16x16xf32>, vector<16x16xf32> -> vector<16x16xf32>
    %c0_4 = arith.constant 0 : index
    %c0_5 = arith.constant 0 : index
    %4 = vector.load %arg7[%c0_4, %c0_5] : memref<96x16xf32, #tpu.memory_space<vmem>>, vector<16x16xf32>
    tpu.vector_store %arg7[%c0_4, %c0_5], %3 {strides = array<i32>} : memref<96x16xf32, #tpu.memory_space<vmem>>, vector<16x16xf32>,
    %c1 = arith.constant 1 : index
    %c0_6 = arith.constant 0 : index
    %c0_7 = arith.constant 0 : index
    %5 = vector.load %arg5[%c1, %c0_6, %c0_7] : memref<6x16x16xf32, #tpu.memory_space<vmem>>, vector<1x16x16xf32>
    %6 = vector.shape_cast %5 : vector<1x16x16xf32> to vector<16x16xf32>
    %cst_8 = arith.constant dense<0.000000e+00> : vector<16x16xf32>
    %7 = tpu.matmul %0, %6, %cst_8 {dimension_numbers = #tpu.dot_dimension_numbers<[1], [0], [0], [1], [0, 0, 1, 1], [], []>} : vector<16x16xf32>, vector<16x16xf32>, vector<16x16xf32> -> vector<16x16xf32>
    %c16 = arith.constant 16 : index
    %c0_9 = arith.constant 0 : index
    %8 = vector.load %arg7[%c16, %c0_9] : memref<96x16xf32, #tpu.memory_space<vmem>>, vector<16x16xf32>
    tpu.vector_store %arg7[%c16, %c0_9], %7 {strides = array<i32>} : memref<96x16xf32, #tpu.memory_space<vmem>>, vector<16x16xf32>,
    %c2 = arith.constant 2 : index
    %c0_10 = arith.constant 0 : index
    %c0_11 = arith.constant 0 : index
    %9 = vector.load %arg5[%c2, %c0_10, %c0_11] : memref<6x16x16xf32, #tpu.memory_space<vmem>>, vector<1x16x16xf32>
    %10 = vector.shape_cast %9 : vector<1x16x16xf32> to vector<16x16xf32>
    %cst_12 = arith.constant dense<0.000000e+00> : vector<16x16xf32>
    %11 = tpu.matmul %0, %10, %cst_12 {dimension_numbers = #tpu.dot_dimension_numbers<[1], [0], [0], [1], [0, 0, 1, 1], [], []>} : vector<16x16xf32>, vector<16x16xf32>, vector<16x16xf32> -> vector<16x16xf32>
    %c32 = arith.constant 32 : index
    %c0_13 = arith.constant 0 : index
    %12 = vector.load %arg7[%c32, %c0_13] : memref<96x16xf32, #tpu.memory_space<vmem>>, vector<16x16xf32>
    tpu.vector_store %arg7[%c32, %c0_13], %11 {strides = array<i32>} : memref<96x16xf32, #tpu.memory_space<vmem>>, vector<16x16xf32>,
    %c3 = arith.constant 3 : index
    %c0_14 = arith.constant 0 : index
    %c0_15 = arith.constant 0 : index
    %13 = vector.load %arg5[%c3, %c0_14, %c0_15] : memref<6x16x16xf32, #tpu.memory_space<vmem>>, vector<1x16x16xf32>
    %14 = vector.shape_cast %13 : vector<1x16x16xf32> to vector<16x16xf32>
    %cst_16 = arith.constant dense<0.000000e+00> : vector<16x16xf32>
    %15 = tpu.matmul %0, %14, %cst_16 {dimension_numbers = #tpu.dot_dimension_numbers<[1], [0], [0], [1], [0, 0, 1, 1], [], []>} : vector<16x16xf32>, vector<16x16xf32>, vector<16x16xf32> -> vector<16x16xf32>
    %c48 = arith.constant 48 : index
    %c0_17 = arith.constant 0 : index
    %16 = vector.load %arg7[%c48, %c0_17] : memref<96x16xf32, #tpu.memory_space<vmem>>, vector<16x16xf32>
    tpu.vector_store %arg7[%c48, %c0_17], %15 {strides = array<i32>} : memref<96x16xf32, #tpu.memory_space<vmem>>, vector<16x16xf32>,
    %c4 = arith.constant 4 : index
    %c0_18 = arith.constant 0 : index
    %c0_19 = arith.constant 0 : index
    %17 = vector.load %arg5[%c4, %c0_18, %c0_19] : memref<6x16x16xf32, #tpu.memory_space<vmem>>, vector<1x16x16xf32>
    %18 = vector.shape_cast %17 : vector<1x16x16xf32> to vector<16x16xf32>
    %cst_20 = arith.constant dense<0.000000e+00> : vector<16x16xf32>
    %19 = tpu.matmul %0, %18, %cst_20 {dimension_numbers = #tpu.dot_dimension_numbers<[1], [0], [0], [1], [0, 0, 1, 1], [], []>} : vector<16x16xf32>, vector<16x16xf32>, vector<16x16xf32> -> vector<16x16xf32>
    %c64 = arith.constant 64 : index
    %c0_21 = arith.constant 0 : index
    %20 = vector.load %arg7[%c64, %c0_21] : memref<96x16xf32, #tpu.memory_space<vmem>>, vector<16x16xf32>
    tpu.vector_store %arg7[%c64, %c0_21], %19 {strides = array<i32>} : memref<96x16xf32, #tpu.memory_space<vmem>>, vector<16x16xf32>,
    %c5 = arith.constant 5 : index
    %c0_22 = arith.constant 0 : index
    %c0_23 = arith.constant 0 : index
    %21 = vector.load %arg5[%c5, %c0_22, %c0_23] : memref<6x16x16xf32, #tpu.memory_space<vmem>>, vector<1x16x16xf32>
    %22 = vector.shape_cast %21 : vector<1x16x16xf32> to vector<16x16xf32>
    %cst_24 = arith.constant dense<0.000000e+00> : vector<16x16xf32>
    %23 = tpu.matmul %0, %22, %cst_24 {dimension_numbers = #tpu.dot_dimension_numbers<[1], [0], [0], [1], [0, 0, 1, 1], [], []>} : vector<16x16xf32>, vector<16x16xf32>, vector<16x16xf32> -> vector<16x16xf32>
    %c80 = arith.constant 80 : index
    %c0_25 = arith.constant 0 : index
    %24 = vector.load %arg7[%c80, %c0_25] : memref<96x16xf32, #tpu.memory_space<vmem>>, vector<16x16xf32>
    tpu.vector_store %arg7[%c80, %c0_25], %23 {strides = array<i32>} : memref<96x16xf32, #tpu.memory_space<vmem>>, vector<16x16xf32>,
    %c0_26 = arith.constant 0 : index
    %c0_27 = arith.constant 0 : index
    %25 = vector.load %arg7[%c0_26, %c0_27] : memref<96x16xf32, #tpu.memory_space<vmem>>, vector<96x16xf32>
    %c0_28 = arith.constant 0 : index
    %c0_29 = arith.constant 0 : index
    %26 = vector.load %arg2[%c0_28, %c0_29] : memref<16x16xf32, #tpu.memory_space<vmem>>, vector<16x16xf32>
    %cst_30 = arith.constant dense<0.000000e+00> : vector<96x16xf32>
    %27 = tpu.matmul %25, %26, %cst_30 {dimension_numbers = #tpu.dot_dimension_numbers<[1], [0], [0], [1], [0, 0, 1, 1], [], []>} : vector<96x16xf32>, vector<16x16xf32>, vector<96x16xf32> -> vector<96x16xf32>
    %c0_31 = arith.constant 0 : index
    %c0_32 = arith.constant 0 : index
    %c0_33 = arith.constant 0 : index
    %28 = vector.load %arg3[%c0_31, %c0_32, %c0_33] : memref<6x1x1xf32, #tpu.memory_space<vmem>>, vector<6x1x1xf32>
    %c0_34 = arith.constant 0 : index
    %c0_35 = arith.constant 0 : index
    %c0_36 = arith.constant 0 : index
    %29 = vector.load %arg4[%c0_34, %c0_35, %c0_36] : memref<6x1x1xf32, #tpu.memory_space<vmem>>, vector<6x1x1xf32>
    %30 = vector.extract_strided_slice %27 {offsets = [0, 0], sizes = [16, 16], strides = [1, 1]} : vector<96x16xf32> to vector<16x16xf32>
    %31 = vector.extract_strided_slice %28 {offsets = [0, 0, 0], sizes = [1, 1, 1], strides = [1, 1, 1]} : vector<6x1x1xf32> to vector<1x1x1xf32>
    %32 = vector.shape_cast %31 : vector<1x1x1xf32> to vector<1x1xf32>
    %33 = vector.broadcast %32 : vector<1x1xf32> to vector<16x16xf32>
    %34 = arith.mulf %30, %33 : vector<16x16xf32>
    %35 = vector.extract_strided_slice %29 {offsets = [0, 0, 0], sizes = [1, 1, 1], strides = [1, 1, 1]} : vector<6x1x1xf32> to vector<1x1x1xf32>
    %36 = vector.shape_cast %35 : vector<1x1x1xf32> to vector<1x1xf32>
    %37 = vector.broadcast %36 : vector<1x1xf32> to vector<16x16xf32>
    %38 = arith.subf %34, %37 : vector<16x16xf32>
    %c0_37 = arith.constant 0 : index
    %c0_38 = arith.constant 0 : index
    %c0_39 = arith.constant 0 : index
    %39 = vector.load %arg6[%c0_37, %c0_38, %c0_39] : memref<6x16x16xf32, #tpu.memory_space<vmem>>, vector<1x16x16xf32>
    %40 = vector.shape_cast %39 : vector<1x16x16xf32> to vector<16x16xf32>
    %41 = vector.shape_cast %38 : vector<16x16xf32> to vector<1x16x16xf32>
    tpu.vector_store %arg6[%c0_37, %c0_38, %c0_39], %41 {strides = array<i32>} : memref<6x16x16xf32, #tpu.memory_space<vmem>>, vector<1x16x16xf32>,
    %42 = vector.extract_strided_slice %27 {offsets = [16, 0], sizes = [16, 16], strides = [1, 1]} : vector<96x16xf32> to vector<16x16xf32>
    %43 = vector.extract_strided_slice %28 {offsets = [1, 0, 0], sizes = [1, 1, 1], strides = [1, 1, 1]} : vector<6x1x1xf32> to vector<1x1x1xf32>
    %44 = vector.shape_cast %43 : vector<1x1x1xf32> to vector<1x1xf32>
    %45 = vector.broadcast %44 : vector<1x1xf32> to vector<16x16xf32>
    %46 = arith.mulf %42, %45 : vector<16x16xf32>
    %47 = vector.extract_strided_slice %29 {offsets = [1, 0, 0], sizes = [1, 1, 1], strides = [1, 1, 1]} : vector<6x1x1xf32> to vector<1x1x1xf32>
    %48 = vector.shape_cast %47 : vector<1x1x1xf32> to vector<1x1xf32>
    %49 = vector.broadcast %48 : vector<1x1xf32> to vector<16x16xf32>
    %50 = arith.subf %46, %49 : vector<16x16xf32>
    %c1_40 = arith.constant 1 : index
    %c0_41 = arith.constant 0 : index
    %c0_42 = arith.constant 0 : index
    %51 = vector.load %arg6[%c1_40, %c0_41, %c0_42] : memref<6x16x16xf32, #tpu.memory_space<vmem>>, vector<1x16x16xf32>
    %52 = vector.shape_cast %51 : vector<1x16x16xf32> to vector<16x16xf32>
    %53 = vector.shape_cast %50 : vector<16x16xf32> to vector<1x16x16xf32>
    tpu.vector_store %arg6[%c1_40, %c0_41, %c0_42], %53 {strides = array<i32>} : memref<6x16x16xf32, #tpu.memory_space<vmem>>, vector<1x16x16xf32>,
    %54 = vector.extract_strided_slice %27 {offsets = [32, 0], sizes = [16, 16], strides = [1, 1]} : vector<96x16xf32> to vector<16x16xf32>
    %55 = vector.extract_strided_slice %28 {offsets = [2, 0, 0], sizes = [1, 1, 1], strides = [1, 1, 1]} : vector<6x1x1xf32> to vector<1x1x1xf32>
    %56 = vector.shape_cast %55 : vector<1x1x1xf32> to vector<1x1xf32>
    %57 = vector.broadcast %56 : vector<1x1xf32> to vector<16x16xf32>
    %58 = arith.mulf %54, %57 : vector<16x16xf32>
    %59 = vector.extract_strided_slice %29 {offsets = [2, 0, 0], sizes = [1, 1, 1], strides = [1, 1, 1]} : vector<6x1x1xf32> to vector<1x1x1xf32>
    %60 = vector.shape_cast %59 : vector<1x1x1xf32> to vector<1x1xf32>
    %61 = vector.broadcast %60 : vector<1x1xf32> to vector<16x16xf32>
    %62 = arith.subf %58, %61 : vector<16x16xf32>
    %c2_43 = arith.constant 2 : index
    %c0_44 = arith.constant 0 : index
    %c0_45 = arith.constant 0 : index
    %63 = vector.load %arg6[%c2_43, %c0_44, %c0_45] : memref<6x16x16xf32, #tpu.memory_space<vmem>>, vector<1x16x16xf32>
    %64 = vector.shape_cast %63 : vector<1x16x16xf32> to vector<16x16xf32>
    %65 = vector.shape_cast %62 : vector<16x16xf32> to vector<1x16x16xf32>
    tpu.vector_store %arg6[%c2_43, %c0_44, %c0_45], %65 {strides = array<i32>} : memref<6x16x16xf32, #tpu.memory_space<vmem>>, vector<1x16x16xf32>,
    %66 = vector.extract_strided_slice %27 {offsets = [48, 0], sizes = [16, 16], strides = [1, 1]} : vector<96x16xf32> to vector<16x16xf32>
    %67 = vector.extract_strided_slice %28 {offsets = [3, 0, 0], sizes = [1, 1, 1], strides = [1, 1, 1]} : vector<6x1x1xf32> to vector<1x1x1xf32>
    %68 = vector.shape_cast %67 : vector<1x1x1xf32> to vector<1x1xf32>
    %69 = vector.broadcast %68 : vector<1x1xf32> to vector<16x16xf32>
    %70 = arith.mulf %66, %69 : vector<16x16xf32>
    %71 = vector.extract_strided_slice %29 {offsets = [3, 0, 0], sizes = [1, 1, 1], strides = [1, 1, 1]} : vector<6x1x1xf32> to vector<1x1x1xf32>
    %72 = vector.shape_cast %71 : vector<1x1x1xf32> to vector<1x1xf32>
    %73 = vector.broadcast %72 : vector<1x1xf32> to vector<16x16xf32>
    %74 = arith.subf %70, %73 : vector<16x16xf32>
    %c3_46 = arith.constant 3 : index
    %c0_47 = arith.constant 0 : index
    %c0_48 = arith.constant 0 : index
    %75 = vector.load %arg6[%c3_46, %c0_47, %c0_48] : memref<6x16x16xf32, #tpu.memory_space<vmem>>, vector<1x16x16xf32>
    %76 = vector.shape_cast %75 : vector<1x16x16xf32> to vector<16x16xf32>
    %77 = vector.shape_cast %74 : vector<16x16xf32> to vector<1x16x16xf32>
    tpu.vector_store %arg6[%c3_46, %c0_47, %c0_48], %77 {strides = array<i32>} : memref<6x16x16xf32, #tpu.memory_space<vmem>>, vector<1x16x16xf32>,
    %78 = vector.extract_strided_slice %27 {offsets = [64, 0], sizes = [16, 16], strides = [1, 1]} : vector<96x16xf32> to vector<16x16xf32>
    %79 = vector.extract_strided_slice %28 {offsets = [4, 0, 0], sizes = [1, 1, 1], strides = [1, 1, 1]} : vector<6x1x1xf32> to vector<1x1x1xf32>
    %80 = vector.shape_cast %79 : vector<1x1x1xf32> to vector<1x1xf32>
    %81 = vector.broadcast %80 : vector<1x1xf32> to vector<16x16xf32>
    %82 = arith.mulf %78, %81 : vector<16x16xf32>
    %83 = vector.extract_strided_slice %29 {offsets = [4, 0, 0], sizes = [1, 1, 1], strides = [1, 1, 1]} : vector<6x1x1xf32> to vector<1x1x1xf32>
    %84 = vector.shape_cast %83 : vector<1x1x1xf32> to vector<1x1xf32>
    %85 = vector.broadcast %84 : vector<1x1xf32> to vector<16x16xf32>
    %86 = arith.subf %82, %85 : vector<16x16xf32>
    %c4_49 = arith.constant 4 : index
    %c0_50 = arith.constant 0 : index
    %c0_51 = arith.constant 0 : index
    %87 = vector.load %arg6[%c4_49, %c0_50, %c0_51] : memref<6x16x16xf32, #tpu.memory_space<vmem>>, vector<1x16x16xf32>
    %88 = vector.shape_cast %87 : vector<1x16x16xf32> to vector<16x16xf32>
    %89 = vector.shape_cast %86 : vector<16x16xf32> to vector<1x16x16xf32>
    tpu.vector_store %arg6[%c4_49, %c0_50, %c0_51], %89 {strides = array<i32>} : memref<6x16x16xf32, #tpu.memory_space<vmem>>, vector<1x16x16xf32>,
    %90 = vector.extract_strided_slice %27 {offsets = [80, 0], sizes = [16, 16], strides = [1, 1]} : vector<96x16xf32> to vector<16x16xf32>
    %91 = vector.extract_strided_slice %28 {offsets = [5, 0, 0], sizes = [1, 1, 1], strides = [1, 1, 1]} : vector<6x1x1xf32> to vector<1x1x1xf32>
    %92 = vector.shape_cast %91 : vector<1x1x1xf32> to vector<1x1xf32>
    %93 = vector.broadcast %92 : vector<1x1xf32> to vector<16x16xf32>
    %94 = arith.mulf %90, %93 : vector<16x16xf32>
    %95 = vector.extract_strided_slice %29 {offsets = [5, 0, 0], sizes = [1, 1, 1], strides = [1, 1, 1]} : vector<6x1x1xf32> to vector<1x1x1xf32>
    %96 = vector.shape_cast %95 : vector<1x1x1xf32> to vector<1x1xf32>
    %97 = vector.broadcast %96 : vector<1x1xf32> to vector<16x16xf32>
    %98 = arith.subf %94, %97 : vector<16x16xf32>
    %c5_52 = arith.constant 5 : index
    %c0_53 = arith.constant 0 : index
    %c0_54 = arith.constant 0 : index
    %99 = vector.load %arg6[%c5_52, %c0_53, %c0_54] : memref<6x16x16xf32, #tpu.memory_space<vmem>>, vector<1x16x16xf32>
    %100 = vector.shape_cast %99 : vector<1x16x16xf32> to vector<16x16xf32>
    %101 = vector.shape_cast %98 : vector<16x16xf32> to vector<1x16x16xf32>
    tpu.vector_store %arg6[%c5_52, %c0_53, %c0_54], %101 {strides = array<i32>} : memref<6x16x16xf32, #tpu.memory_space<vmem>>, vector<1x16x16xf32>,
    return
  }
  func.func @transform_0(%arg0: i32) -> (i32, i32) {
    %c0_i32 = arith.constant 0 : i32
    %c0_i32_0 = arith.constant 0 : i32
    %c0_i32_1 = arith.constant 0 : i32
    return %c0_i32, %c0_i32_0 : i32, i32
  }
  func.func @transform_1(%arg0: i32) -> (i32, i32) {
    %c0_i32 = arith.constant 0 : i32
    %c0_i32_0 = arith.constant 0 : i32
    %c0_i32_1 = arith.constant 0 : i32
    return %c0_i32, %c0_i32_0 : i32, i32
  }
  func.func @transform_2(%arg0: i32) -> (i32, i32, i32) {
    %c0_i32 = arith.constant 0 : i32
    %c0_i32_0 = arith.constant 0 : i32
    %c0_i32_1 = arith.constant 0 : i32
    return %arg0, %c0_i32, %c0_i32_0 : i32, i32, i32
  }
  func.func @transform_3(%arg0: i32) -> (i32, i32, i32) {
    %c0_i32 = arith.constant 0 : i32
    %c0_i32_0 = arith.constant 0 : i32
    %c0_i32_1 = arith.constant 0 : i32
    return %arg0, %c0_i32, %c0_i32_0 : i32, i32, i32
  }
  func.func @transform_4(%arg0: i32) -> (i32, i32, i32) {
    %c0_i32 = arith.constant 0 : i32
    %c0_i32_0 = arith.constant 0 : i32
    %c0_i32_1 = arith.constant 0 : i32
    return %arg0, %c0_i32, %c0_i32_0 : i32, i32, i32
  }
  func.func @transform_5(%arg0: i32) -> (i32, i32, i32) {
    %c0_i32 = arith.constant 0 : i32
    %c0_i32_0 = arith.constant 0 : i32
    %c0_i32_1 = arith.constant 0 : i32
    return %arg0, %c0_i32, %c0_i32_0 : i32, i32, i32
  }
}

</mosaic_0001>

<llo_original>
// kernel: tpu_custom_call.1
$region0: #{tpu_custom_call.1}
  #allocation0 [shape = 'u32[]', space=smem, size = 0x4, offset = 0x4, fixed_abs, tag = 'smem constant byte address 0x4 - core index']
  #allocation1 [shape = 'u32[144,128]{1,0:T(1,128)}', space=vmem, size = 0x12000, scoped, tag = 'internal scratch']
  #allocation2 [shape = 'f32[96,16]{1,0:T(8,128)}', space=vmem, size = 0xc000, scoped, tag = 'scratch operand']
  %s0 = inlined_call_operand.hbm [shape: f32[16,16], index: 0, kind: input, shape index: {}]
  %s1 = inlined_call_operand.hbm [shape: f32[16,16], index: 1, kind: input, shape index: {}]
  %s2 = inlined_call_operand.vmem [shape: f32[6,1,1], index: 2, kind: input, shape index: {}]
  %s3 = inlined_call_operand.vmem [shape: f32[6,1,1], index: 3, kind: input, shape index: {}]
  %s4 = inlined_call_operand.hbm [shape: f32[6,16,16], index: 4, kind: input, shape index: {}]
  %s5 = inlined_call_operand.hbm [shape: f32[6,16,16], index: 5, kind: output, shape index: {}]
  %s6 = sld [smem:[#allocation0]]
  $region42: #{tpu_custom_call.1} parent=0
    _
  %s8 = ssub.s32 1, %s6
  %s9 = scalar_select 0, %s8, %s6
  $region1: #{tpu_custom_call.1} parent=0
    #allocation3 [shape = 'u8[8192]{0}', space=vmem, size = 0x2000, scoped, tag = 'input window, operand 0, single buffered']
    #allocation4 [shape = 's32[1]{0}', space=sflag, size = 0x4, scoped, tag = 'scoped memory for tpu_custom_call.1']
    #allocation5 [shape = 's32[1]{0}', space=sflag, size = 0x4, scoped, tag = 'scoped memory for tpu_custom_call.1']
    #allocation6 [shape = 'u8[8192]{0}', space=vmem, size = 0x2000, scoped, tag = 'input window, operand 1, single buffered']
    #allocation7 [shape = 's32[1]{0}', space=sflag, size = 0x4, scoped, tag = 'scoped memory for tpu_custom_call.1']
    #allocation8 [shape = 'u8[49152]{0}', space=vmem, size = 0xc000, scoped, tag = 'input window, operand 4, single buffered']
    #allocation9 [shape = 'u8[49152]{0}', space=vmem, size = 0xc000, scoped, tag = 'output window, operand 0, single buffered']
    %10 = vsyncpa [#allocation4], 0
    %11 = vsyncpa [#allocation7], 0
    %12 = vsyncpa [#allocation5], 0
    // Predicated region
    $region2: #{tpu_custom_call.1} parent=1 // pred_check
      _
    $region3: #{tpu_custom_call.1} parent=1 // pred_check_branch
      %14 = sbr.rel (0) target = $region5
    $region4: #{tpu_custom_call.1} parent=1 // pred_region
      %s16 = ssub.s32 256, 256
      %17 = vsyncadd [#allocation4], %s16
      %s18 = sshll.u32 [#allocation3], 4
      %s19 = int_to_ptr.vmem [resolvable:$true] %s18
      %24 = dma.hbm_to_vmem [thread:$0]  %s0, 256, %s19, [#allocation4], 128, 128, 8
    $region5: #{tpu_custom_call.1} parent=1 // pred_fallthru
      _
    // Predicated region
    $region6: #{tpu_custom_call.1} parent=1 // pred_check
      _
    $region7: #{tpu_custom_call.1} parent=1 // pred_check_branch
      %26 = sbr.rel (0) target = $region9
    $region8: #{tpu_custom_call.1} parent=1 // pred_region
      %s28 = ssub.s32 256, 256
      %29 = vsyncadd [#allocation7], %s28
      %s30 = sshll.u32 [#allocation6], 4
      %s31 = int_to_ptr.vmem [resolvable:$true] %s30
      %36 = dma.hbm_to_vmem [thread:$0]  %s1, 256, %s31, [#allocation7], 128, 128, 8
    $region9: #{tpu_custom_call.1} parent=1 // pred_fallthru
      _
    // Predicated region
    $region10: #{tpu_custom_call.1} parent=1 // pred_check
      _
    $region11: #{tpu_custom_call.1} parent=1 // pred_check_branch
      %38 = sbr.rel (0) target = $region13
    $region12: #{tpu_custom_call.1} parent=1 // pred_region
      _
    $region13: #{tpu_custom_call.1} parent=1 // pred_fallthru
      _
    // Predicated region
    $region14: #{tpu_custom_call.1} parent=1 // pred_check
      _
    $region15: #{tpu_custom_call.1} parent=1 // pred_check_branch
      %40 = sbr.rel (0) target = $region17
    $region16: #{tpu_custom_call.1} parent=1 // pred_region
      _
    $region17: #{tpu_custom_call.1} parent=1 // pred_fallthru
      _
    // Predicated region
    $region18: #{tpu_custom_call.1} parent=1 // pred_check
      _
    $region19: #{tpu_custom_call.1} parent=1 // pred_check_branch
      %42 = sbr.rel (0) target = $region21
    $region20: #{tpu_custom_call.1} parent=1 // pred_region
      %s44 = ssub.s32 1536, 1536
      %45 = vsyncadd [#allocation7], %s44
      %s46 = sshll.u32 [#allocation8], 4
      %s47 = int_to_ptr.vmem [resolvable:$true] %s46
      %52 = dma.hbm_to_vmem [thread:$0]  %s4, 1536, %s47, [#allocation7], 128, 128, 8
    $region21: #{tpu_custom_call.1} parent=1 // pred_fallthru
      _
    // Predicated region
    $region22: #{tpu_custom_call.1} parent=1 // pred_check
      _
    $region23: #{tpu_custom_call.1} parent=1 // pred_check_branch
      %54 = sbr.rel (0) target = $region25
    $region24: #{tpu_custom_call.1} parent=1 // pred_region
      %55 = dma.done [#allocation4], 256
    $region25: #{tpu_custom_call.1} parent=1 // pred_fallthru
      _
    // Predicated region
    $region26: #{tpu_custom_call.1} parent=1 // pred_check
      _
    $region27: #{tpu_custom_call.1} parent=1 // pred_check_branch
      %57 = sbr.rel (0) target = $region29
    $region28: #{tpu_custom_call.1} parent=1 // pred_region
      %58 = dma.done [#allocation7], 256
    $region29: #{tpu_custom_call.1} parent=1 // pred_fallthru
      _
    // Predicated region
    $region30: #{tpu_custom_call.1} parent=1 // pred_check
      _
    $region31: #{tpu_custom_call.1} parent=1 // pred_check_branch
      %60 = sbr.rel (0) target = $region33
    $region32: #{tpu_custom_call.1} parent=1 // pred_region
      %61 = dma.done [#allocation7], 1536
    $region33: #{tpu_custom_call.1} parent=1 // pred_fallthru
      _
    %v62 = vld [vmem:[#allocation3] sm:$0xff]
    %v63 = vld [vmem:[#allocation3 + $0x8] sm:$0xff]
    %v64 = vld [vmem:[#allocation8] sm:$0xff]
    %v65 = vld [vmem:[#allocation8 + $0x8] sm:$0xff]
    %vm66 = vcmask 130048
    %v68 = vsel %vm66, %v62, 0
    %v71 = vsel %vm66, %v63, 0
    %73 = vmatprep.subr.mxu0 0.0
    %74 = vmatpush1.msra.mxu0 0.0
    %75 = vmatprep.subr.mxu0 0.0
    %76 = vmatpush1.msra.mxu0 0.0
    %77 = vmatprep.subr.mxu0 0.0
    %78 = vmatpush1.msra.mxu0 0.0
    %79 = vmatprep.subr.mxu0 0.0
    %80 = vmatpush1.msra.mxu0 0.0
    %81 = vmatprep.subr.mxu0 0.0
    %82 = vmatpush1.msra.mxu0 0.0
    %83 = vmatprep.subr.mxu0 0.0
    %84 = vmatpush1.msra.mxu0 0.0
    %85 = vmatprep.subr.mxu0 0.0
    %86 = vmatpush1.msra.mxu0 0.0
    %87 = vmatprep.subr.mxu0 0.0
    %88 = vmatpush1.msra.mxu0 0.0
    %89 = vmatprep.subr.mxu0 0.0
    %90 = vmatpush1.msra.mxu0 0.0
    %91 = vmatprep.subr.mxu0 0.0
    %92 = vmatpush1.msra.mxu0 0.0
    %93 = vmatprep.subr.mxu0 0.0
    %94 = vmatpush1.msra.mxu0 0.0
    %95 = vmatprep.subr.mxu0 0.0
    %96 = vmatpush1.msra.mxu0 0.0
    %97 = vmatprep.subr.mxu0 0.0
    %98 = vmatpush1.msra.mxu0 0.0
    %99 = vmatprep.subr.mxu0 0.0
    %100 = vmatpush1.msra.mxu0 0.0
    %101 = vmatprep.subr.mxu0 0.0
    %102 = vmatpush1.msra.mxu0 %v65
    %103 = vmatprep.subr.mxu0 0.0
    %104 = vmatpush1.msra.mxu0 %v64
    %105 = vmatprep.subr.mxu0 0.0
    %106 = vmatpush2.msra.mxu0 0.0
    %107 = vmatprep.subr.mxu0 0.0
    %108 = vmatpush2.msra.mxu0 0.0
    %109 = vmatprep.subr.mxu0 0.0
    %110 = vmatpush2.msra.mxu0 0.0
    %111 = vmatprep.subr.mxu0 0.0
    %112 = vmatpush2.msra.mxu0 0.0
    %113 = vmatprep.subr.mxu0 0.0
    %114 = vmatpush2.msra.mxu0 0.0
    %115 = vmatprep.subr.mxu0 0.0
    %116 = vmatpush2.msra.mxu0 0.0
    %117 = vmatprep.subr.mxu0 0.0
    %118 = vmatpush2.msra.mxu0 0.0
    %119 = vmatprep.subr.mxu0 0.0
    %120 = vmatpush2.msra.mxu0 0.0
    %121 = vmatprep.subr.mxu0 0.0
    %122 = vmatpush2.msra.mxu0 0.0
    %123 = vmatprep.subr.mxu0 0.0
    %124 = vmatpush2.msra.mxu0 0.0
    %125 = vmatprep.subr.mxu0 0.0
    %126 = vmatpush2.msra.mxu0 0.0
    %127 = vmatprep.subr.mxu0 0.0
    %128 = vmatpush2.msra.mxu0 0.0
    %129 = vmatprep.subr.mxu0 0.0
    %130 = vmatpush2.msra.mxu0 0.0
    %131 = vmatprep.subr.mxu0 0.0
    %132 = vmatpush2.msra.mxu0 0.0
    %133 = vmatprep.subr.mxu0 0.0
    %134 = vmatpush2.msra.mxu0 0.0
    %135 = vmatprep.subr.mxu0 0.0
    %136 = vmatpush2.msra.mxu0 0.0
    %137 = vmatprep.mubr.f32.mxu0 0.0
    %138 = vmatmul.mubr.f32.gmra.mxu0 %v68
    %v139 = vpop.f32.mrf.mxu0
    %v140 = vadd.f32 0.0, %v139
    %v141 = vpop.f32.mrf.mxu0
    %142 = vmatprep.mubr.f32.mxu0 0.0
    %143 = vmatmul.mubr.f32.gmra.mxu0 %v71
    %v144 = vpop.f32.mrf.mxu0
    %v145 = vadd.f32 0.0, %v144
    %v146 = vpop.f32.mrf.mxu0
    %147 = vdwg.mxu0
    %148 = vst.msk [vmem:[#allocation2] sm:$0xff] %vm66, %v140
    %149 = vst.msk [vmem:[#allocation2 + $0x8] sm:$0xff] %vm66, %v145
    %s150 = scalar_lea.vmem [#allocation8], 16
    %v151 = vld [vmem:[%s150] sm:$0xff]
    %v152 = vld [vmem:[%s150 + $0x8] sm:$0xff]
    %153 = vmatprep.subr.mxu0 0.0
    %154 = vmatpush1.msra.mxu0 0.0
    %155 = vmatprep.subr.mxu0 0.0
    %156 = vmatpush1.msra.mxu0 0.0
    %157 = vmatprep.subr.mxu0 0.0
    %158 = vmatpush1.msra.mxu0 0.0
    %159 = vmatprep.subr.mxu0 0.0
    %160 = vmatpush1.msra.mxu0 0.0
    %161 = vmatprep.subr.mxu0 0.0
    %162 = vmatpush1.msra.mxu0 0.0
    %163 = vmatprep.subr.mxu0 0.0
    %164 = vmatpush1.msra.mxu0 0.0
    %165 = vmatprep.subr.mxu0 0.0
    %166 = vmatpush1.msra.mxu0 0.0
    %167 = vmatprep.subr.mxu0 0.0
    %168 = vmatpush1.msra.mxu0 0.0
    %169 = vmatprep.subr.mxu0 0.0
    %170 = vmatpush1.msra.mxu0 0.0
    %171 = vmatprep.subr.mxu0 0.0
    %172 = vmatpush1.msra.mxu0 0.0
    %173 = vmatprep.subr.mxu0 0.0
    %174 = vmatpush1.msra.mxu0 0.0
    %175 = vmatprep.subr.mxu0 0.0
    %176 = vmatpush1.msra.mxu0 0.0
    %177 = vmatprep.subr.mxu0 0.0
    %178 = vmatpush1.msra.mxu0 0.0
    %179 = vmatprep.subr.mxu0 0.0
    %180 = vmatpush1.msra.mxu0 0.0
    %181 = vmatprep.subr.mxu0 0.0
    %182 = vmatpush1.msra.mxu0 %v152
    %183 = vmatprep.subr.mxu0 0.0
    %184 = vmatpush1.msra.mxu0 %v151
    %185 = vmatprep.subr.mxu0 0.0
    %186 = vmatpush2.msra.mxu0 0.0
    %187 = vmatprep.subr.mxu0 0.0
    %188 = vmatpush2.msra.mxu0 0.0
    %189 = vmatprep.subr.mxu0 0.0
    %190 = vmatpush2.msra.mxu0 0.0
    %191 = vmatprep.subr.mxu0 0.0
    %192 = vmatpush2.msra.mxu0 0.0
    %193 = vmatprep.subr.mxu0 0.0
    %194 = vmatpush2.msra.mxu0 0.0
    %195 = vmatprep.subr.mxu0 0.0
    %196 = vmatpush2.msra.mxu0 0.0
    %197 = vmatprep.subr.mxu0 0.0
    %198 = vmatpush2.msra.mxu0 0.0
    %199 = vmatprep.subr.mxu0 0.0
    %200 = vmatpush2.msra.mxu0 0.0
    %201 = vmatprep.subr.mxu0 0.0
    %202 = vmatpush2.msra.mxu0 0.0
    %203 = vmatprep.subr.mxu0 0.0
    %204 = vmatpush2.msra.mxu0 0.0
    %205 = vmatprep.subr.mxu0 0.0
    %206 = vmatpush2.msra.mxu0 0.0
    %207 = vmatprep.subr.mxu0 0.0
    %208 = vmatpush2.msra.mxu0 0.0
    %209 = vmatprep.subr.mxu0 0.0
    %210 = vmatpush2.msra.mxu0 0.0
    %211 = vmatprep.subr.mxu0 0.0
    %212 = vmatpush2.msra.mxu0 0.0
    %213 = vmatprep.subr.mxu0 0.0
    %214 = vmatpush2.msra.mxu0 0.0
    %215 = vmatprep.subr.mxu0 0.0
    %216 = vmatpush2.msra.mxu0 0.0
    %217 = vmatprep.mubr.f32.mxu0 0.0
    %218 = vmatmul.mubr.f32.gmra.mxu0 %v68
    %v219 = vpop.f32.mrf.mxu0
    %v220 = vadd.f32 0.0, %v219
    %v221 = vpop.f32.mrf.mxu0
    %222 = vmatprep.mubr.f32.mxu0 0.0
    %223 = vmatmul.mubr.f32.gmra.mxu0 %v71
    %v224 = vpop.f32.mrf.mxu0
    %v225 = vadd.f32 0.0, %v224
    %v226 = vpop.f32.mrf.mxu0
    %227 = vdwg.mxu0
    %228 = vst.msk [vmem:[#allocation2 + $0x10] sm:$0xff] %vm66, %v220
    %229 = vst.msk [vmem:[#allocation2 + $0x18] sm:$0xff] %vm66, %v225
    %s230 = scalar_lea.vmem [#allocation8], 32
    %v231 = vld [vmem:[%s230] sm:$0xff]
    %v232 = vld [vmem:[%s230 + $0x8] sm:$0xff]
    %233 = vmatprep.subr.mxu0 0.0
    %234 = vmatpush1.msra.mxu0 0.0
    %235 = vmatprep.subr.mxu0 0.0
    %236 = vmatpush1.msra.mxu0 0.0
    %237 = vmatprep.subr.mxu0 0.0
    %238 = vmatpush1.msra.mxu0 0.0
    %239 = vmatprep.subr.mxu0 0.0
    %240 = vmatpush1.msra.mxu0 0.0
    %241 = vmatprep.subr.mxu0 0.0
    %242 = vmatpush1.msra.mxu0 0.0
    %243 = vmatprep.subr.mxu0 0.0
    %244 = vmatpush1.msra.mxu0 0.0
    %245 = vmatprep.subr.mxu0 0.0
    %246 = vmatpush1.msra.mxu0 0.0
    %247 = vmatprep.subr.mxu0 0.0
    %248 = vmatpush1.msra.mxu0 0.0
    %249 = vmatprep.subr.mxu0 0.0
    %250 = vmatpush1.msra.mxu0 0.0
    %251 = vmatprep.subr.mxu0 0.0
    %252 = vmatpush1.msra.mxu0 0.0
    %253 = vmatprep.subr.mxu0 0.0
    %254 = vmatpush1.msra.mxu0 0.0
    %255 = vmatprep.subr.mxu0 0.0
    %256 = vmatpush1.msra.mxu0 0.0
    %257 = vmatprep.subr.mxu0 0.0
    %258 = vmatpush1.msra.mxu0 0.0
    %259 = vmatprep.subr.mxu0 0.0
    %260 = vmatpush1.msra.mxu0 0.0
    %261 = vmatprep.subr.mxu0 0.0
    %262 = vmatpush1.msra.mxu0 %v232
    %263 = vmatprep.subr.mxu0 0.0
    %264 = vmatpush1.msra.mxu0 %v231
    %265 = vmatprep.subr.mxu0 0.0
    %266 = vmatpush2.msra.mxu0 0.0
    %267 = vmatprep.subr.mxu0 0.0
    %268 = vmatpush2.msra.mxu0 0.0
    %269 = vmatprep.subr.mxu0 0.0
    %270 = vmatpush2.msra.mxu0 0.0
    %271 = vmatprep.subr.mxu0 0.0
    %272 = vmatpush2.msra.mxu0 0.0
    %273 = vmatprep.subr.mxu0 0.0
    %274 = vmatpush2.msra.mxu0 0.0
    %275 = vmatprep.subr.mxu0 0.0
    %276 = vmatpush2.msra.mxu0 0.0
    %277 = vmatprep.subr.mxu0 0.0
    %278 = vmatpush2.msra.mxu0 0.0
    %279 = vmatprep.subr.mxu0 0.0
    %280 = vmatpush2.msra.mxu0 0.0
    %281 = vmatprep.subr.mxu0 0.0
    %282 = vmatpush2.msra.mxu0 0.0
    %283 = vmatprep.subr.mxu0 0.0
    %284 = vmatpush2.msra.mxu0 0.0
    %285 = vmatprep.subr.mxu0 0.0
    %286 = vmatpush2.msra.mxu0 0.0
    %287 = vmatprep.subr.mxu0 0.0
    %288 = vmatpush2.msra.mxu0 0.0
    %289 = vmatprep.subr.mxu0 0.0
    %290 = vmatpush2.msra.mxu0 0.0
    %291 = vmatprep.subr.mxu0 0.0
    %292 = vmatpush2.msra.mxu0 0.0
    %293 = vmatprep.subr.mxu0 0.0
    %294 = vmatpush2.msra.mxu0 0.0
    %295 = vmatprep.subr.mxu0 0.0
    %296 = vmatpush2.msra.mxu0 0.0
    %297 = vmatprep.mubr.f32.mxu0 0.0
    %298 = vmatmul.mubr.f32.gmra.mxu0 %v68
    %v299 = vpop.f32.mrf.mxu0
    %v300 = vadd.f32 0.0, %v299
    %v301 = vpop.f32.mrf.mxu0
    %302 = vmatprep.mubr.f32.mxu0 0.0
    %303 = vmatmul.mubr.f32.gmra.mxu0 %v71
    %v304 = vpop.f32.mrf.mxu0
    %v305 = vadd.f32 0.0, %v304
    %v306 = vpop.f32.mrf.mxu0
    %307 = vdwg.mxu0
    %308 = vst.msk [vmem:[#allocation2 + $0x20] sm:$0xff] %vm66, %v300
    %309 = vst.msk [vmem:[#allocation2 + $0x28] sm:$0xff] %vm66, %v305
    %s310 = scalar_lea.vmem [#allocation8], 48
    %v311 = vld [vmem:[%s310] sm:$0xff]
    %v312 = vld [vmem:[%s310 + $0x8] sm:$0xff]
    %313 = vmatprep.subr.mxu0 0.0
    %314 = vmatpush1.msra.mxu0 0.0
    %315 = vmatprep.subr.mxu0 0.0
    %316 = vmatpush1.msra.mxu0 0.0
    %317 = vmatprep.subr.mxu0 0.0
    %318 = vmatpush1.msra.mxu0 0.0
    %319 = vmatprep.subr.mxu0 0.0
    %320 = vmatpush1.msra.mxu0 0.0
    %321 = vmatprep.subr.mxu0 0.0
    %322 = vmatpush1.msra.mxu0 0.0
    %323 = vmatprep.subr.mxu0 0.0
    %324 = vmatpush1.msra.mxu0 0.0
    %325 = vmatprep.subr.mxu0 0.0
    %326 = vmatpush1.msra.mxu0 0.0
    %327 = vmatprep.subr.mxu0 0.0
    %328 = vmatpush1.msra.mxu0 0.0
    %329 = vmatprep.subr.mxu0 0.0
    %330 = vmatpush1.msra.mxu0 0.0
    %331 = vmatprep.subr.mxu0 0.0
    %332 = vmatpush1.msra.mxu0 0.0
    %333 = vmatprep.subr.mxu0 0.0
    %334 = vmatpush1.msra.mxu0 0.0
    %335 = vmatprep.subr.mxu0 0.0
    %336 = vmatpush1.msra.mxu0 0.0
    %337 = vmatprep.subr.mxu0 0.0
    %338 = vmatpush1.msra.mxu0 0.0
    %339 = vmatprep.subr.mxu0 0.0
    %340 = vmatpush1.msra.mxu0 0.0
    %341 = vmatprep.subr.mxu0 0.0
    %342 = vmatpush1.msra.mxu0 %v312
    %343 = vmatprep.subr.mxu0 0.0
    %344 = vmatpush1.msra.mxu0 %v311
    %345 = vmatprep.subr.mxu0 0.0
    %346 = vmatpush2.msra.mxu0 0.0
    %347 = vmatprep.subr.mxu0 0.0
    %348 = vmatpush2.msra.mxu0 0.0
    %349 = vmatprep.subr.mxu0 0.0
    %350 = vmatpush2.msra.mxu0 0.0
    %351 = vmatprep.subr.mxu0 0.0
    %352 = vmatpush2.msra.mxu0 0.0
    %353 = vmatprep.subr.mxu0 0.0
    %354 = vmatpush2.msra.mxu0 0.0
    %355 = vmatprep.subr.mxu0 0.0
    %356 = vmatpush2.msra.mxu0 0.0
    %357 = vmatprep.subr.mxu0 0.0
    %358 = vmatpush2.msra.mxu0 0.0
    %359 = vmatprep.subr.mxu0 0.0
    %360 = vmatpush2.msra.mxu0 0.0
    %361 = vmatprep.subr.mxu0 0.0
    %362 = vmatpush2.msra.mxu0 0.0
    %363 = vmatprep.subr.mxu0 0.0
    %364 = vmatpush2.msra.mxu0 0.0
    %365 = vmatprep.subr.mxu0 0.0
    %366 = vmatpush2.msra.mxu0 0.0
    %367 = vmatprep.subr.mxu0 0.0
    %368 = vmatpush2.msra.mxu0 0.0
    %369 = vmatprep.subr.mxu0 0.0
    %370 = vmatpush2.msra.mxu0 0.0
    %371 = vmatprep.subr.mxu0 0.0
    %372 = vmatpush2.msra.mxu0 0.0
    %373 = vmatprep.subr.mxu0 0.0
    %374 = vmatpush2.msra.mxu0 0.0
    %375 = vmatprep.subr.mxu0 0.0
    %376 = vmatpush2.msra.mxu0 0.0
    %377 = vmatprep.mubr.f32.mxu0 0.0
    %378 = vmatmul.mubr.f32.gmra.mxu0 %v68
    %v379 = vpop.f32.mrf.mxu0
    %v380 = vadd.f32 0.0, %v379
    %v381 = vpop.f32.mrf.mxu0
    %382 = vmatprep.mubr.f32.mxu0 0.0
    %383 = vmatmul.mubr.f32.gmra.mxu0 %v71
    %v384 = vpop.f32.mrf.mxu0
    %v385 = vadd.f32 0.0, %v384
    %v386 = vpop.f32.mrf.mxu0
    %387 = vdwg.mxu0
    %388 = vst.msk [vmem:[#allocation2 + $0x30] sm:$0xff] %vm66, %v380
    %389 = vst.msk [vmem:[#allocation2 + $0x38] sm:$0xff] %vm66, %v385
    %s390 = scalar_lea.vmem [#allocation8], 64
    %v391 = vld [vmem:[%s390] sm:$0xff]
    %v392 = vld [vmem:[%s390 + $0x8] sm:$0xff]
    %393 = vmatprep.subr.mxu0 0.0
    %394 = vmatpush1.msra.mxu0 0.0
    %395 = vmatprep.subr.mxu0 0.0
    %396 = vmatpush1.msra.mxu0 0.0
    %397 = vmatprep.subr.mxu0 0.0
    %398 = vmatpush1.msra.mxu0 0.0
    %399 = vmatprep.subr.mxu0 0.0
    %400 = vmatpush1.msra.mxu0 0.0
    %401 = vmatprep.subr.mxu0 0.0
    %402 = vmatpush1.msra.mxu0 0.0
    %403 = vmatprep.subr.mxu0 0.0
    %404 = vmatpush1.msra.mxu0 0.0
    %405 = vmatprep.subr.mxu0 0.0
    %406 = vmatpush1.msra.mxu0 0.0
    %407 = vmatprep.subr.mxu0 0.0
    %408 = vmatpush1.msra.mxu0 0.0
    %409 = vmatprep.subr.mxu0 0.0
    %410 = vmatpush1.msra.mxu0 0.0
    %411 = vmatprep.subr.mxu0 0.0
    %412 = vmatpush1.msra.mxu0 0.0
    %413 = vmatprep.subr.mxu0 0.0
    %414 = vmatpush1.msra.mxu0 0.0
    %415 = vmatprep.subr.mxu0 0.0
    %416 = vmatpush1.msra.mxu0 0.0
    %417 = vmatprep.subr.mxu0 0.0
    %418 = vmatpush1.msra.mxu0 0.0
    %419 = vmatprep.subr.mxu0 0.0
    %420 = vmatpush1.msra.mxu0 0.0
    %421 = vmatprep.subr.mxu0 0.0
    %422 = vmatpush1.msra.mxu0 %v392
    %423 = vmatprep.subr.mxu0 0.0
    %424 = vmatpush1.msra.mxu0 %v391
    %425 = vmatprep.subr.mxu0 0.0
    %426 = vmatpush2.msra.mxu0 0.0
    %427 = vmatprep.subr.mxu0 0.0
    %428 = vmatpush2.msra.mxu0 0.0
    %429 = vmatprep.subr.mxu0 0.0
    %430 = vmatpush2.msra.mxu0 0.0
    %431 = vmatprep.subr.mxu0 0.0
    %432 = vmatpush2.msra.mxu0 0.0
    %433 = vmatprep.subr.mxu0 0.0
    %434 = vmatpush2.msra.mxu0 0.0
    %435 = vmatprep.subr.mxu0 0.0
    %436 = vmatpush2.msra.mxu0 0.0
    %437 = vmatprep.subr.mxu0 0.0
    %438 = vmatpush2.msra.mxu0 0.0
    %439 = vmatprep.subr.mxu0 0.0
    %440 = vmatpush2.msra.mxu0 0.0
    %441 = vmatprep.subr.mxu0 0.0
    %442 = vmatpush2.msra.mxu0 0.0
    %443 = vmatprep.subr.mxu0 0.0
    %444 = vmatpush2.msra.mxu0 0.0
    %445 = vmatprep.subr.mxu0 0.0
    %446 = vmatpush2.msra.mxu0 0.0
    %447 = vmatprep.subr.mxu0 0.0
    %448 = vmatpush2.msra.mxu0 0.0
    %449 = vmatprep.subr.mxu0 0.0
    %450 = vmatpush2.msra.mxu0 0.0
    %451 = vmatprep.subr.mxu0 0.0
    %452 = vmatpush2.msra.mxu0 0.0
    %453 = vmatprep.subr.mxu0 0.0
    %454 = vmatpush2.msra.mxu0 0.0
    %455 = vmatprep.subr.mxu0 0.0
    %456 = vmatpush2.msra.mxu0 0.0
    %457 = vmatprep.mubr.f32.mxu0 0.0
    %458 = vmatmul.mubr.f32.gmra.mxu0 %v68
    %v459 = vpop.f32.mrf.mxu0
    %v460 = vadd.f32 0.0, %v459
    %v461 = vpop.f32.mrf.mxu0
    %462 = vmatprep.mubr.f32.mxu0 0.0
    %463 = vmatmul.mubr.f32.gmra.mxu0 %v71
    %v464 = vpop.f32.mrf.mxu0
    %v465 = vadd.f32 0.0, %v464
    %v466 = vpop.f32.mrf.mxu0
    %467 = vdwg.mxu0
    %468 = vst.msk [vmem:[#allocation2 + $0x40] sm:$0xff] %vm66, %v460
    %469 = vst.msk [vmem:[#allocation2 + $0x48] sm:$0xff] %vm66, %v465
    %s470 = scalar_lea.vmem [#allocation8], 80
    %v471 = vld [vmem:[%s470] sm:$0xff]
    %v472 = vld [vmem:[%s470 + $0x8] sm:$0xff]
    %473 = vmatprep.subr.mxu0 0.0
    %474 = vmatpush1.msra.mxu0 0.0
    %475 = vmatprep.subr.mxu0 0.0
    %476 = vmatpush1.msra.mxu0 0.0
    %477 = vmatprep.subr.mxu0 0.0
    %478 = vmatpush1.msra.mxu0 0.0
    %479 = vmatprep.subr.mxu0 0.0
    %480 = vmatpush1.msra.mxu0 0.0
    %481 = vmatprep.subr.mxu0 0.0
    %482 = vmatpush1.msra.mxu0 0.0
    %483 = vmatprep.subr.mxu0 0.0
    %484 = vmatpush1.msra.mxu0 0.0
    %485 = vmatprep.subr.mxu0 0.0
    %486 = vmatpush1.msra.mxu0 0.0
    %487 = vmatprep.subr.mxu0 0.0
    %488 = vmatpush1.msra.mxu0 0.0
    %489 = vmatprep.subr.mxu0 0.0
    %490 = vmatpush1.msra.mxu0 0.0
    %491 = vmatprep.subr.mxu0 0.0
    %492 = vmatpush1.msra.mxu0 0.0
    %493 = vmatprep.subr.mxu0 0.0
    %494 = vmatpush1.msra.mxu0 0.0
    %495 = vmatprep.subr.mxu0 0.0
    %496 = vmatpush1.msra.mxu0 0.0
    %497 = vmatprep.subr.mxu0 0.0
    %498 = vmatpush1.msra.mxu0 0.0
    %499 = vmatprep.subr.mxu0 0.0
    %500 = vmatpush1.msra.mxu0 0.0
    %501 = vmatprep.subr.mxu0 0.0
    %502 = vmatpush1.msra.mxu0 %v472
    %503 = vmatprep.subr.mxu0 0.0
    %504 = vmatpush1.msra.mxu0 %v471
    %505 = vmatprep.subr.mxu0 0.0
    %506 = vmatpush2.msra.mxu0 0.0
    %507 = vmatprep.subr.mxu0 0.0
    %508 = vmatpush2.msra.mxu0 0.0
    %509 = vmatprep.subr.mxu0 0.0
    %510 = vmatpush2.msra.mxu0 0.0
    %511 = vmatprep.subr.mxu0 0.0
    %512 = vmatpush2.msra.mxu0 0.0
    %513 = vmatprep.subr.mxu0 0.0
    %514 = vmatpush2.msra.mxu0 0.0
    %515 = vmatprep.subr.mxu0 0.0
    %516 = vmatpush2.msra.mxu0 0.0
    %517 = vmatprep.subr.mxu0 0.0
    %518 = vmatpush2.msra.mxu0 0.0
    %519 = vmatprep.subr.mxu0 0.0
    %520 = vmatpush2.msra.mxu0 0.0
    %521 = vmatprep.subr.mxu0 0.0
    %522 = vmatpush2.msra.mxu0 0.0
    %523 = vmatprep.subr.mxu0 0.0
    %524 = vmatpush2.msra.mxu0 0.0
    %525 = vmatprep.subr.mxu0 0.0
    %526 = vmatpush2.msra.mxu0 0.0
    %527 = vmatprep.subr.mxu0 0.0
    %528 = vmatpush2.msra.mxu0 0.0
    %529 = vmatprep.subr.mxu0 0.0
    %530 = vmatpush2.msra.mxu0 0.0
    %531 = vmatprep.subr.mxu0 0.0
    %532 = vmatpush2.msra.mxu0 0.0
    %533 = vmatprep.subr.mxu0 0.0
    %534 = vmatpush2.msra.mxu0 0.0
    %535 = vmatprep.subr.mxu0 0.0
    %536 = vmatpush2.msra.mxu0 0.0
    %537 = vmatprep.mubr.f32.mxu0 0.0
    %538 = vmatmul.mubr.f32.gmra.mxu0 %v68
    %v539 = vpop.f32.mrf.mxu0
    %v540 = vadd.f32 0.0, %v539
    %v541 = vpop.f32.mrf.mxu0
    %542 = vmatprep.mubr.f32.mxu0 0.0
    %543 = vmatmul.mubr.f32.gmra.mxu0 %v71
    %v544 = vpop.f32.mrf.mxu0
    %v545 = vadd.f32 0.0, %v544
    %v546 = vpop.f32.mrf.mxu0
    %547 = vdwg.mxu0
    %548 = vst.msk [vmem:[#allocation2 + $0x50] sm:$0xff] %vm66, %v540
    %549 = vst.msk [vmem:[#allocation2 + $0x58] sm:$0xff] %vm66, %v545
    %v550 = vld [vmem:[#allocation2] sm:$0xff]
    %v551 = vld [vmem:[#allocation2 + $0x8] sm:$0xff]
    %v552 = vld [vmem:[#allocation2 + $0x10] sm:$0xff]
    %v553 = vld [vmem:[#allocation2 + $0x18] sm:$0xff]
    %v554 = vld [vmem:[#allocation2 + $0x20] sm:$0xff]
    %v555 = vld [vmem:[#allocation2 + $0x28] sm:$0xff]
    %v556 = vld [vmem:[#allocation2 + $0x30] sm:$0xff]
    %v557 = vld [vmem:[#allocation2 + $0x38] sm:$0xff]
    %v558 = vld [vmem:[#allocation2 + $0x40] sm:$0xff]
    %v559 = vld [vmem:[#allocation2 + $0x48] sm:$0xff]
    %v560 = vld [vmem:[#allocation2 + $0x50] sm:$0xff]
    %v561 = vld [vmem:[#allocation2 + $0x58] sm:$0xff]
    %v562 = vld [vmem:[#allocation6] sm:$0xff]
    %v563 = vld [vmem:[#allocation6 + $0x8] sm:$0xff]
    %v565 = vsel %vm66, %v550, 0
    %v568 = vsel %vm66, %v551, 0
    %v571 = vsel %vm66, %v552, 0
    %v574 = vsel %vm66, %v553, 0
    %v577 = vsel %vm66, %v554, 0
    %v580 = vsel %vm66, %v555, 0
    %v583 = vsel %vm66, %v556, 0
    %v586 = vsel %vm66, %v557, 0
    %v589 = vsel %vm66, %v558, 0
    %v592 = vsel %vm66, %v559, 0
    %v595 = vsel %vm66, %v560, 0
    %v598 = vsel %vm66, %v561, 0
    %600 = vmatprep.subr.mxu0 0.0
    %601 = vmatpush1.msra.mxu0 0.0
    %602 = vmatprep.subr.mxu0 0.0
    %603 = vmatpush1.msra.mxu0 0.0
    %604 = vmatprep.subr.mxu0 0.0
    %605 = vmatpush1.msra.mxu0 0.0
    %606 = vmatprep.subr.mxu0 0.0
    %607 = vmatpush1.msra.mxu0 0.0
    %608 = vmatprep.subr.mxu0 0.0
    %609 = vmatpush1.msra.mxu0 0.0
    %610 = vmatprep.subr.mxu0 0.0
    %611 = vmatpush1.msra.mxu0 0.0
    %612 = vmatprep.subr.mxu0 0.0
    %613 = vmatpush1.msra.mxu0 0.0
    %614 = vmatprep.subr.mxu0 0.0
    %615 = vmatpush1.msra.mxu0 0.0
    %616 = vmatprep.subr.mxu0 0.0
    %617 = vmatpush1.msra.mxu0 0.0
    %618 = vmatprep.subr.mxu0 0.0
    %619 = vmatpush1.msra.mxu0 0.0
    %620 = vmatprep.subr.mxu0 0.0
    %621 = vmatpush1.msra.mxu0 0.0
    %622 = vmatprep.subr.mxu0 0.0
    %623 = vmatpush1.msra.mxu0 0.0
    %624 = vmatprep.subr.mxu0 0.0
    %625 = vmatpush1.msra.mxu0 0.0
    %626 = vmatprep.subr.mxu0 0.0
    %627 = vmatpush1.msra.mxu0 0.0
    %628 = vmatprep.subr.mxu0 0.0
    %629 = vmatpush1.msra.mxu0 %v563
    %630 = vmatprep.subr.mxu0 0.0
    %631 = vmatpush1.msra.mxu0 %v562
    %632 = vmatprep.subr.mxu0 0.0
    %633 = vmatpush2.msra.mxu0 0.0
    %634 = vmatprep.subr.mxu0 0.0
    %635 = vmatpush2.msra.mxu0 0.0
    %636 = vmatprep.subr.mxu0 0.0
    %637 = vmatpush2.msra.mxu0 0.0
    %638 = vmatprep.subr.mxu0 0.0
    %639 = vmatpush2.msra.mxu0 0.0
    %640 = vmatprep.subr.mxu0 0.0
    %641 = vmatpush2.msra.mxu0 0.0
    %642 = vmatprep.subr.mxu0 0.0
    %643 = vmatpush2.msra.mxu0 0.0
    %644 = vmatprep.subr.mxu0 0.0
    %645 = vmatpush2.msra.mxu0 0.0
    %646 = vmatprep.subr.mxu0 0.0
    %647 = vmatpush2.msra.mxu0 0.0
    %648 = vmatprep.subr.mxu0 0.0
    %649 = vmatpush2.msra.mxu0 0.0
    %650 = vmatprep.subr.mxu0 0.0
    %651 = vmatpush2.msra.mxu0 0.0
    %652 = vmatprep.subr.mxu0 0.0
    %653 = vmatpush2.msra.mxu0 0.0
    %654 = vmatprep.subr.mxu0 0.0
    %655 = vmatpush2.msra.mxu0 0.0
    %656 = vmatprep.subr.mxu0 0.0
    %657 = vmatpush2.msra.mxu0 0.0
    %658 = vmatprep.subr.mxu0 0.0
    %659 = vmatpush2.msra.mxu0 0.0
    %660 = vmatprep.subr.mxu0 0.0
    %661 = vmatpush2.msra.mxu0 0.0
    %662 = vmatprep.subr.mxu0 0.0
    %663 = vmatpush2.msra.mxu0 0.0
    %664 = vmatprep.mubr.f32.mxu0 0.0
    %665 = vmatmul.mubr.f32.gmra.mxu0 %v565
    %v666 = vpop.f32.mrf.mxu0
    %v667 = vadd.f32 0.0, %v666
    %v668 = vpop.f32.mrf.mxu0
    %669 = vmatprep.mubr.f32.mxu0 0.0
    %670 = vmatmul.mubr.f32.gmra.mxu0 %v568
    %v671 = vpop.f32.mrf.mxu0
    %v672 = vadd.f32 0.0, %v671
    %v673 = vpop.f32.mrf.mxu0
    %674 = vmatprep.mubr.f32.mxu0 0.0
    %675 = vmatmul.mubr.f32.gmra.mxu0 %v571
    %v676 = vpop.f32.mrf.mxu0
    %v677 = vadd.f32 0.0, %v676
    %v678 = vpop.f32.mrf.mxu0
    %679 = vmatprep.mubr.f32.mxu0 0.0
    %680 = vmatmul.mubr.f32.gmra.mxu0 %v574
    %v681 = vpop.f32.mrf.mxu0
    %v682 = vadd.f32 0.0, %v681
    %v683 = vpop.f32.mrf.mxu0
    %684 = vmatprep.mubr.f32.mxu0 0.0
    %685 = vmatmul.mubr.f32.gmra.mxu0 %v577
    %v686 = vpop.f32.mrf.mxu0
    %v687 = vadd.f32 0.0, %v686
    %v688 = vpop.f32.mrf.mxu0
    %689 = vmatprep.mubr.f32.mxu0 0.0
    %690 = vmatmul.mubr.f32.gmra.mxu0 %v580
    %v691 = vpop.f32.mrf.mxu0
    %v692 = vadd.f32 0.0, %v691
    %v693 = vpop.f32.mrf.mxu0
    %694 = vmatprep.mubr.f32.mxu0 0.0
    %695 = vmatmul.mubr.f32.gmra.mxu0 %v583
    %v696 = vpop.f32.mrf.mxu0
    %v697 = vadd.f32 0.0, %v696
    %v698 = vpop.f32.mrf.mxu0
    %699 = vmatprep.mubr.f32.mxu0 0.0
    %700 = vmatmul.mubr.f32.gmra.mxu0 %v586
    %v701 = vpop.f32.mrf.mxu0
    %v702 = vadd.f32 0.0, %v701
    %v703 = vpop.f32.mrf.mxu0
    %704 = vmatprep.mubr.f32.mxu0 0.0
    %705 = vmatmul.mubr.f32.gmra.mxu0 %v589
    %v706 = vpop.f32.mrf.mxu0
    %v707 = vadd.f32 0.0, %v706
    %v708 = vpop.f32.mrf.mxu0
    %709 = vmatprep.mubr.f32.mxu0 0.0
    %710 = vmatmul.mubr.f32.gmra.mxu0 %v592
    %v711 = vpop.f32.mrf.mxu0
    %v712 = vadd.f32 0.0, %v711
    %v713 = vpop.f32.mrf.mxu0
    %714 = vmatprep.mubr.f32.mxu0 0.0
    %715 = vmatmul.mubr.f32.gmra.mxu0 %v595
    %v716 = vpop.f32.mrf.mxu0
    %v717 = vadd.f32 0.0, %v716
    %v718 = vpop.f32.mrf.mxu0
    %719 = vmatprep.mubr.f32.mxu0 0.0
    %720 = vmatmul.mubr.f32.gmra.mxu0 %v598
    %v721 = vpop.f32.mrf.mxu0
    %v722 = vadd.f32 0.0, %v721
    %v723 = vpop.f32.mrf.mxu0
    %724 = vdwg.mxu0
    %v725 = vld [vmem:[%s2] sm:$0x1]
    %v726 = vld [vmem:[%s2 + $0x1] sm:$0x1]
    %v727 = vld [vmem:[%s2 + $0x2] sm:$0x1]
    %v728 = vld [vmem:[%s2 + $0x3] sm:$0x1]
    %v729 = vld [vmem:[%s2 + $0x4] sm:$0x1]
    %v730 = vld [vmem:[%s2 + $0x5] sm:$0x1]
    %v731 = vld [vmem:[%s3] sm:$0x1]
    %v732 = vld [vmem:[%s3 + $0x1] sm:$0x1]
    %v733 = vld [vmem:[%s3 + $0x2] sm:$0x1]
    %v734 = vld [vmem:[%s3 + $0x3] sm:$0x1]
    %v735 = vld [vmem:[%s3 + $0x4] sm:$0x1]
    %v736 = vld [vmem:[%s3 + $0x5] sm:$0x1]
    %v738 = vlaneseq
    %v739 = vshrl.u32 %v738, 7
    %v740 = vsub.s32 0, %v739
    %v741 = vrot.slane %v725, %v740
    %742 = vset.pattern.permute.xlu0 0
    %743 = vperm.xlu0 %742, %v741
    %v744 = vpop.permute.xlu0 %743
    %v746 = vmul.f32 %v667, %v744
    %v747 = vmul.f32 %v672, %v744
    %v749 = vlaneseq
    %v750 = vshrl.u32 %v749, 7
    %v751 = vsub.s32 0, %v750
    %v752 = vrot.slane %v731, %v751
    %753 = vset.pattern.permute.xlu0 0
    %754 = vperm.xlu0 %753, %v752
    %v755 = vpop.permute.xlu0 %754
    %v757 = vsub.f32 %v746, %v755
    %v758 = vsub.f32 %v747, %v755
    %759 = vst.msk [vmem:[#allocation9] sm:$0xff] %vm66, %v757
    %760 = vst.msk [vmem:[#allocation9 + $0x8] sm:$0xff] %vm66, %v758
    %v762 = vlaneseq
    %v763 = vshrl.u32 %v762, 7
    %v764 = vsub.s32 0, %v763
    %v765 = vrot.slane %v726, %v764
    %766 = vset.pattern.permute.xlu0 0
    %767 = vperm.xlu0 %766, %v765
    %v768 = vpop.permute.xlu0 %767
    %v770 = vmul.f32 %v677, %v768
    %v771 = vmul.f32 %v682, %v768
    %v773 = vlaneseq
    %v774 = vshrl.u32 %v773, 7
    %v775 = vsub.s32 0, %v774
    %v776 = vrot.slane %v732, %v775
    %777 = vset.pattern.permute.xlu0 0
    %778 = vperm.xlu0 %777, %v776
    %v779 = vpop.permute.xlu0 %778
    %v781 = vsub.f32 %v770, %v779
    %v782 = vsub.f32 %v771, %v779
    %s783 = scalar_lea.vmem [#allocation9], 16
    %784 = vst.msk [vmem:[%s783] sm:$0xff] %vm66, %v781
    %785 = vst.msk [vmem:[%s783 + $0x8] sm:$0xff] %vm66, %v782
    %v787 = vlaneseq
    %v788 = vshrl.u32 %v787, 7
    %v789 = vsub.s32 0, %v788
    %v790 = vrot.slane %v727, %v789
    %791 = vset.pattern.permute.xlu0 0
    %792 = vperm.xlu0 %791, %v790
    %v793 = vpop.permute.xlu0 %792
    %v795 = vmul.f32 %v687, %v793
    %v796 = vmul.f32 %v692, %v793
    %v798 = vlaneseq
    %v799 = vshrl.u32 %v798, 7
    %v800 = vsub.s32 0, %v799
    %v801 = vrot.slane %v733, %v800
    %802 = vset.pattern.permute.xlu0 0
    %803 = vperm.xlu0 %802, %v801
    %v804 = vpop.permute.xlu0 %803
    %v806 = vsub.f32 %v795, %v804
    %v807 = vsub.f32 %v796, %v804
    %s808 = scalar_lea.vmem [#allocation9], 32
    %809 = vst.msk [vmem:[%s808] sm:$0xff] %vm66, %v806
    %810 = vst.msk [vmem:[%s808 + $0x8] sm:$0xff] %vm66, %v807
    %v812 = vlaneseq
    %v813 = vshrl.u32 %v812, 7
    %v814 = vsub.s32 0, %v813
    %v815 = vrot.slane %v728, %v814
    %816 = vset.pattern.permute.xlu0 0
    %817 = vperm.xlu0 %816, %v815
    %v818 = vpop.permute.xlu0 %817
    %v820 = vmul.f32 %v697, %v818
    %v821 = vmul.f32 %v702, %v818
    %v823 = vlaneseq
    %v824 = vshrl.u32 %v823, 7
    %v825 = vsub.s32 0, %v824
    %v826 = vrot.slane %v734, %v825
    %827 = vset.pattern.permute.xlu0 0
    %828 = vperm.xlu0 %827, %v826
    %v829 = vpop.permute.xlu0 %828
    %v831 = vsub.f32 %v820, %v829
    %v832 = vsub.f32 %v821, %v829
    %s833 = scalar_lea.vmem [#allocation9], 48
    %834 = vst.msk [vmem:[%s833] sm:$0xff] %vm66, %v831
    %835 = vst.msk [vmem:[%s833 + $0x8] sm:$0xff] %vm66, %v832
    %v837 = vlaneseq
    %v838 = vshrl.u32 %v837, 7
    %v839 = vsub.s32 0, %v838
    %v840 = vrot.slane %v729, %v839
    %841 = vset.pattern.permute.xlu0 0
    %842 = vperm.xlu0 %841, %v840
    %v843 = vpop.permute.xlu0 %842
    %v845 = vmul.f32 %v707, %v843
    %v846 = vmul.f32 %v712, %v843
    %v848 = vlaneseq
    %v849 = vshrl.u32 %v848, 7
    %v850 = vsub.s32 0, %v849
    %v851 = vrot.slane %v735, %v850
    %852 = vset.pattern.permute.xlu0 0
    %853 = vperm.xlu0 %852, %v851
    %v854 = vpop.permute.xlu0 %853
    %v856 = vsub.f32 %v845, %v854
    %v857 = vsub.f32 %v846, %v854
    %s858 = scalar_lea.vmem [#allocation9], 64
    %859 = vst.msk [vmem:[%s858] sm:$0xff] %vm66, %v856
    %860 = vst.msk [vmem:[%s858 + $0x8] sm:$0xff] %vm66, %v857
    %v862 = vlaneseq
    %v863 = vshrl.u32 %v862, 7
    %v864 = vsub.s32 0, %v863
    %v865 = vrot.slane %v730, %v864
    %866 = vset.pattern.permute.xlu0 0
    %867 = vperm.xlu0 %866, %v865
    %v868 = vpop.permute.xlu0 %867
    %v870 = vmul.f32 %v717, %v868
    %v871 = vmul.f32 %v722, %v868
    %v873 = vlaneseq
    %v874 = vshrl.u32 %v873, 7
    %v875 = vsub.s32 0, %v874
    %v876 = vrot.slane %v736, %v875
    %877 = vset.pattern.permute.xlu0 0
    %878 = vperm.xlu0 %877, %v876
    %v879 = vpop.permute.xlu0 %878
    %v881 = vsub.f32 %v870, %v879
    %v882 = vsub.f32 %v871, %v879
    %s883 = scalar_lea.vmem [#allocation9], 80
    %884 = vst.msk [vmem:[%s883] sm:$0xff] %vm66, %v881
    %885 = vst.msk [vmem:[%s883 + $0x8] sm:$0xff] %vm66, %v882
    // Predicated region
    $region34: #{tpu_custom_call.1} parent=1 // pred_check
      _
    $region35: #{tpu_custom_call.1} parent=1 // pred_check_branch
      %887 = sbr.rel (0) target = $region37
    $region36: #{tpu_custom_call.1} parent=1 // pred_region
      %s889 = ssub.s32 1536, 1536
      %890 = vsyncadd [#allocation5], %s889
      %s891 = sshll.u32 [#allocation9], 4
      %s892 = int_to_ptr.vmem [resolvable:$true] %s891
      %897 = dma.vmem_to_hbm [thread:$0]  %s892, 1536, %s5, [#allocation5], 128, 128, 8
    $region37: #{tpu_custom_call.1} parent=1 // pred_fallthru
      _
    // Predicated region
    $region38: #{tpu_custom_call.1} parent=1 // pred_check
      _
    $region39: #{tpu_custom_call.1} parent=1 // pred_check_branch
      %899 = sbr.rel (0) target = $region41
    $region40: #{tpu_custom_call.1} parent=1 // pred_region
      %900 = dma.done [#allocation5], 1536
    $region41: #{tpu_custom_call.1} parent=1 // pred_fallthru
      _
    %901 = vsyncpa [#allocation4], 1
    %902 = vsyncpa [#allocation7], 1
    %903 = vsyncpa [#allocation5], 1

</llo_original>
